<compile_context>
chip_gen: v7x
topology: tpu7x:2x2x1
jax: 0.10.0
libtpu: 0.0.40
codegen_flags: <defaults>
</compile_context>

<pallas_src>
import math

import jax
import jax.numpy as jnp
from jax import lax
from jax.experimental import pallas as pl
from jax.experimental.pallas import tpu as pltpu

# ---- model hyperparameters (small, consistent with the module) ----
DIM = 128          # module default is 512; scaled down for the example
N_HEADS = 4
N_KV_HEADS = 2
HEAD_DIM = DIM // N_HEADS            # 32
HALF = HEAD_DIM // 2                 # 16
N_REP = N_HEADS // N_KV_HEADS        # 2
BATCH = 2
SEQ = 16
ROPE_THETA = 10000.0  # precompute_freqs_cis default (ModelArgs.rope_theta not passed in forward)

# fused-projection column layout (lane-aligned slabs)
Q_W = N_HEADS * HEAD_DIM             # 128  rotated q columns
K_W = N_KV_HEADS * HEAD_DIM          # 64   rotated k columns
SLAB_W = 256                         # [q (128) | k (64) | pad (64)] per rotary slab
V_W = N_KV_HEADS * HEAD_DIM          # 64
V_SLAB_W = 128                       # v slab padded to one vreg tile
QKV_W = 2 * SLAB_W + V_SLAB_W        # 640
K_OFF = Q_W                          # k columns start at lane 128 inside the rotated slab


# ---------------- rotary tables (glue, plain JAX) ----------------
def precompute_cos_sin(head_dim: int, seq_len: int, theta: float = ROPE_THETA):
    inv_freq = 1.0 / (theta ** (jnp.arange(0, head_dim, 2, dtype=jnp.float32)[: head_dim // 2] / head_dim))
    t = jnp.arange(seq_len, dtype=jnp.float32)
    freqs = jnp.outer(t, inv_freq)            # (S, head_dim//2)
    return jnp.cos(freqs), jnp.sin(freqs)


# ---------------- Pallas kernel ----------------
def rotary_attn_kernel(x_ref, wqkv_ref, wo_ref, cos_ref, sin_ref, mask_ref, o_ref, attn_ref):
    # x_ref: (B*S, D) bf16, wqkv_ref: (D, 640) bf16, wo_ref: (128, D) bf16
    # cos_ref/sin_ref: (B*S, 256) f32, mask_ref: (B*H*S, B*Hkv*S) f32 additive mask
    # o_ref: (B*S, D) f32, attn_ref: VMEM scratch (B*S, 128) f32
    S = SEQ

    # 1) fused q|k|v projection: one bf16 MXU matmul, fp32 accumulate        (B*S, 640)
    qkv = jnp.dot(x_ref[...], wqkv_ref[...], preferred_element_type=jnp.float32)

    # 2) rotary: both slabs are vreg-tile aligned (lane offsets 0 and 256) -> pure VPU.
    #    Slab A holds [per-head evens | per-head odds] de-interleaved, slab B the partner
    #    (odds|evens); sin table carries the -/+ sign so rot = A*cos + B*sin_signed.
    rot = (qkv[:, :SLAB_W] * cos_ref[...]
           + qkv[:, SLAB_W:2 * SLAB_W] * sin_ref[...]).astype(jnp.bfloat16)   # (B*S, 256)
    v_all = qkv[:, 2 * SLAB_W:2 * SLAB_W + V_W].astype(jnp.bfloat16)          # (B*S, 64)

    # 3) stack (head, batch) blocks on the sublane axis -> one block-diagonal attention.
    q_st = jnp.concatenate(
        [rot[b * S:(b + 1) * S, h * HEAD_DIM:(h + 1) * HEAD_DIM]
         for h in range(N_HEADS) for b in range(BATCH)], axis=0)               # (B*H*S, 32)
    k_st = jnp.concatenate(
        [rot[b * S:(b + 1) * S, K_OFF + g * HEAD_DIM:K_OFF + (g + 1) * HEAD_DIM]
         for g in range(N_KV_HEADS) for b in range(BATCH)], axis=0)            # (B*Hkv*S, 32)
    v_st = jnp.concatenate(
        [v_all[b * S:(b + 1) * S, g * HEAD_DIM:(g + 1) * HEAD_DIM]
         for g in range(N_KV_HEADS) for b in range(BATCH)], axis=0)            # (B*Hkv*S, 32)

    # 4) one QK matmul, one masked softmax, one PV matmul for ALL heads/batches.
    #    1/sqrt(head_dim) is already folded into the q weight columns.
    dn = (((1,), (1,)), ((), ()))   # contract last dims -> no k transpose materialized
    sc = lax.dot_general(q_st, k_st, dn, preferred_element_type=jnp.float32)   # (128, 64)
    sc = sc + mask_ref[...]         # causal + same-batch + same-kv-group, additive -1e30

    m = jnp.max(sc, axis=-1, keepdims=True)
    p = jnp.exp(sc - m)
    inv = pl.reciprocal(jnp.sum(p, axis=-1, keepdims=True), approx=True)
    p = (p * inv).astype(jnp.bfloat16)

    out_st = jnp.dot(p, v_st, preferred_element_type=jnp.float32)              # (128, 32)

    # 5) un-stack into the (B*S, n_heads*head_dim) scratch at each head's column slot.
    for h in range(N_HEADS):
        for b in range(BATCH):
            r = (h * BATCH + b) * S
            attn_ref[b * S:(b + 1) * S, h * HEAD_DIM:(h + 1) * HEAD_DIM] = out_st[r:r + S, :]

    # 6) single lane-dense output projection.
    o_ref[...] = jnp.dot(attn_ref[...].astype(jnp.bfloat16), wo_ref[...],
                         preferred_element_type=jnp.float32)


# ---------------- one-time weight / table preparation (hoisted out of the call path) ----------------
def prepare(wq_w, wk_w, wv_w, wo_w, batch, seq):
    """w*_w are PyTorch-layout weights (out_features, in_features)."""
    D = wq_w.shape[1]
    scale = 1.0 / math.sqrt(HEAD_DIM)
    even = jnp.arange(0, HEAD_DIM, 2)
    odd = even + 1

    def gather_cols(bases, first, second):
        return jnp.concatenate([jnp.concatenate([b + first, b + second]) for b in bases])

    q_bases = [h * HEAD_DIM for h in range(N_HEADS)]
    k_bases = [g * HEAD_DIM for g in range(N_KV_HEADS)]
    q_A = gather_cols(q_bases, even, odd)    # per-head [evens | odds]
    q_B = gather_cols(q_bases, odd, even)    # partner  [odds | evens]
    k_A = gather_cols(k_bases, even, odd)
    k_B = gather_cols(k_bases, odd, even)

    wq_s = wq_w.T * scale                    # fold 1/sqrt(head_dim) into q columns
    wk_t = wk_w.T
    wv_t = wv_w.T
    rot_pad = jnp.zeros((D, SLAB_W - (Q_W + K_W)), jnp.float32)        # (D, 64)
    slab_A = jnp.concatenate([wq_s[:, q_A], wk_t[:, k_A], rot_pad], axis=1)   # (D, 256)
    slab_B = jnp.concatenate([wq_s[:, q_B], wk_t[:, k_B], rot_pad], axis=1)   # (D, 256)
    slab_V = jnp.concatenate([wv_t, jnp.zeros((D, V_SLAB_W - V_W), jnp.float32)], axis=1)  # (D, 128)
    wqkv = jnp.concatenate([slab_A, slab_B, slab_V], axis=1).astype(jnp.bfloat16)           # (D, 640)
    wo_b = wo_w.T.astype(jnp.bfloat16)                                                       # (128, D)

    # cos / sign-folded-sin tables matching the per-head [evens | odds] slab layout
    cos, sin = precompute_cos_sin(HEAD_DIM, seq)            # (S, 16) each
    cos_h = jnp.concatenate([cos, cos], axis=1)             # (S, 32)
    sin_h = jnp.concatenate([-sin, sin], axis=1)            # (S, 32)
    nh = N_HEADS + N_KV_HEADS
    pad_w = SLAB_W - nh * HEAD_DIM                          # 64
    cos_row = jnp.concatenate([jnp.tile(cos_h, (1, nh)), jnp.ones((seq, pad_w))], axis=1)
    sin_row = jnp.concatenate([jnp.tile(sin_h, (1, nh)), jnp.zeros((seq, pad_w))], axis=1)
    cos_t = jnp.tile(cos_row, (batch, 1)).astype(jnp.float32)   # (B*S, 256)
    sin_t = jnp.tile(sin_row, (batch, 1)).astype(jnp.float32)

    # additive mask for the block-diagonal scores: same batch, same kv group, causal
    rows = jnp.arange(N_HEADS * batch * seq)
    cols = jnp.arange(N_KV_HEADS * batch * seq)
    r_g = (rows // (batch * seq)) // N_REP
    r_b = (rows // seq) % batch
    r_s = rows % seq
    c_g = cols // (batch * seq)
    c_b = (cols // seq) % batch
    c_s = cols % seq
    valid = ((c_g[None, :] == r_g[:, None])
             & (c_b[None, :] == r_b[:, None])
             & (c_s[None, :] <= r_s[:, None]))
    mask = jnp.where(valid, 0.0, -1e30).astype(jnp.float32)     # (B*H*S, B*Hkv*S) = (128, 64)

    return wqkv, wo_b, cos_t, sin_t, mask


# ---------------- jitted per-call wrapper ----------------
@jax.jit
def rotary_attention(x, wqkv, wo_b, cos_t, sin_t, mask):
    """x: (B, S, D) f32; remaining args come from prepare()."""
    B, S, D = x.shape
    BS = B * S
    x_b = x.reshape(BS, D).astype(jnp.bfloat16)

    out = pl.pallas_call(
        rotary_attn_kernel,
        out_shape=jax.ShapeDtypeStruct((BS, D), jnp.float32),
        grid=(1,),
        in_specs=[
            pl.BlockSpec((BS, D), lambda i: (0, 0)),
            pl.BlockSpec(wqkv.shape, lambda i: (0, 0)),
            pl.BlockSpec(wo_b.shape, lambda i: (0, 0)),
            pl.BlockSpec(cos_t.shape, lambda i: (0, 0)),
            pl.BlockSpec(sin_t.shape, lambda i: (0, 0)),
            pl.BlockSpec(mask.shape, lambda i: (0, 0)),
        ],
        out_specs=pl.BlockSpec((BS, D), lambda i: (0, 0)),
        scratch_shapes=[pltpu.VMEM((BS, N_HEADS * HEAD_DIM), jnp.float32)],
    )(x_b, wqkv, wo_b, cos_t, sin_t, mask)
    return out.reshape(B, S, D)


# ---------------- pure-JAX fp32 reference (interleaved rotary, unpermuted weights) ----------------
def reference(x, wq_w, wk_w, wv_w, wo_w):
    B, S, D = x.shape
    cos, sin = precompute_cos_sin(HEAD_DIM, S)
    q = (x @ wq_w.T).reshape(B, S, N_HEADS, HEAD_DIM)
    k = (x @ wk_w.T).reshape(B, S, N_KV_HEADS, HEAD_DIM)
    v = (x @ wv_w.T).reshape(B, S, N_KV_HEADS, HEAD_DIM)

    def rot(t):
        tr = t.reshape(*t.shape[:-1], HEAD_DIM // 2, 2)
        t0, t1 = tr[..., 0], tr[..., 1]
        c = cos[None, :, None, :]
        s = sin[None, :, None, :]
        return jnp.stack([t0 * c - t1 * s, t0 * s + t1 * c], axis=-1).reshape(t.shape)

    q, k = rot(q), rot(k)
    k = jnp.repeat(k, N_REP, axis=2)
    v = jnp.repeat(v, N_REP, axis=2)
    q, k, v = (a.transpose(0, 2, 1, 3) for a in (q, k, v))
    scores = q @ k.transpose(0, 1, 3, 2) / math.sqrt(HEAD_DIM)
    mask = jnp.where(jnp.triu(jnp.ones((S, S), dtype=bool), 1), -jnp.inf, 0.0)
    scores = scores + mask
    p = jax.nn.softmax(scores, axis=-1)
    out = (p @ v).transpose(0, 2, 1, 3).reshape(B, S, -1)
    return out @ wo_w.T


if __name__ == "__main__":
    key = jax.random.PRNGKey(0)
    kx, kq, kk, kv, ko = jax.random.split(key, 5)

    x = jax.random.normal(kx, (BATCH, SEQ, DIM), dtype=jnp.float32)

    # deterministic PyTorch-Linear-like init: U(-1/sqrt(fan_in), 1/sqrt(fan_in)), shape (out, in)
    def linear_w(k, out_f, in_f):
        bound = 1.0 / math.sqrt(in_f)
        return jax.random.uniform(k, (out_f, in_f), jnp.float32, -bound, bound)

    wq_w = linear_w(kq, N_HEADS * HEAD_DIM, DIM)
    wk_w = linear_w(kk, N_KV_HEADS * HEAD_DIM, DIM)
    wv_w = linear_w(kv, N_KV_HEADS * HEAD_DIM, DIM)
    wo_w = linear_w(ko, DIM, N_HEADS * HEAD_DIM)

    # one-time weight permutation / table build, hoisted out of the per-call path
    wqkv, wo_b, cos_t, sin_t, mask = prepare(wq_w, wk_w, wv_w, wo_w, BATCH, SEQ)

    out = rotary_attention(x, wqkv, wo_b, cos_t, sin_t, mask)
    out = jax.block_until_ready(out)

    ref = reference(x, wq_w, wk_w, wv_w, wo_w)
    assert out.shape == (BATCH, SEQ, DIM)
    # bf16 MXU operands (fp32 accumulate) -> loosened tolerance vs fp32 reference
    assert jnp.allclose(out, ref, atol=5e-2, rtol=5e-2), float(jnp.max(jnp.abs(out - ref)))

    print("KERNEL_OK")
</pallas_src>

<mosaic_0001>
module attributes {stable_mosaic.version = 11 : i64} {
  func.func @rotary_attn_kernel(%arg0: i32, %arg1: memref<32x128xbf16, #tpu.memory_space<vmem>>, %arg2: memref<128x640xbf16, #tpu.memory_space<vmem>>, %arg3: memref<128x128xbf16, #tpu.memory_space<vmem>>, %arg4: memref<32x256xf32, #tpu.memory_space<vmem>>, %arg5: memref<32x256xf32, #tpu.memory_space<vmem>>, %arg6: memref<128x64xf32, #tpu.memory_space<vmem>>, %arg7: memref<32x128xf32, #tpu.memory_space<vmem>>, %arg8: memref<32x128xf32, #tpu.memory_space<vmem>>) attributes {dimension_semantics = [#tpu.dimension_semantics<arbitrary>], iteration_bounds = array<i64: 1>, scalar_prefetch = 0 : i64, scratch_operands = 1 : i64, tpu.core_type = #tpu.core_type<tc>, window_params = [{pipeline_mode = #tpu.pipeline_mode<synchronous>, transform_indices = @transform_0, window_bounds = array<i64: 32, 128>}, {pipeline_mode = #tpu.pipeline_mode<synchronous>, transform_indices = @transform_1, window_bounds = array<i64: 128, 640>}, {pipeline_mode = #tpu.pipeline_mode<synchronous>, transform_indices = @transform_2, window_bounds = array<i64: 128, 128>}, {pipeline_mode = #tpu.pipeline_mode<synchronous>, transform_indices = @transform_3, window_bounds = array<i64: 32, 256>}, {pipeline_mode = #tpu.pipeline_mode<synchronous>, transform_indices = @transform_4, window_bounds = array<i64: 32, 256>}, {pipeline_mode = #tpu.pipeline_mode<synchronous>, transform_indices = @transform_5, window_bounds = array<i64: 128, 64>}, {pipeline_mode = #tpu.pipeline_mode<synchronous>, transform_indices = @transform_6, window_bounds = array<i64: 32, 128>}]} {
    %c0 = arith.constant 0 : index
    %c0_0 = arith.constant 0 : index
    %0 = vector.load %arg1[%c0, %c0_0] : memref<32x128xbf16, #tpu.memory_space<vmem>>, vector<32x128xbf16>
    %c0_1 = arith.constant 0 : index
    %c0_2 = arith.constant 0 : index
    %1 = vector.load %arg2[%c0_1, %c0_2] : memref<128x640xbf16, #tpu.memory_space<vmem>>, vector<128x640xbf16>
    %cst = arith.constant dense<0.000000e+00> : vector<32x640xf32>
    %2 = tpu.matmul %0, %1, %cst {dimension_numbers = #tpu.dot_dimension_numbers<[1], [0], [0], [1], [0, 0, 1, 1], [], []>} : vector<32x128xbf16>, vector<128x640xbf16>, vector<32x640xf32> -> vector<32x640xf32>
    %3 = vector.extract_strided_slice %2 {offsets = [0, 0], sizes = [32, 256], strides = [1, 1]} : vector<32x640xf32> to vector<32x256xf32>
    %c0_3 = arith.constant 0 : index
    %c0_4 = arith.constant 0 : index
    %4 = vector.load %arg4[%c0_3, %c0_4] : memref<32x256xf32, #tpu.memory_space<vmem>>, vector<32x256xf32>
    %5 = arith.mulf %3, %4 : vector<32x256xf32>
    %6 = vector.extract_strided_slice %2 {offsets = [0, 256], sizes = [32, 256], strides = [1, 1]} : vector<32x640xf32> to vector<32x256xf32>
    %c0_5 = arith.constant 0 : index
    %c0_6 = arith.constant 0 : index
    %7 = vector.load %arg5[%c0_5, %c0_6] : memref<32x256xf32, #tpu.memory_space<vmem>>, vector<32x256xf32>
    %8 = arith.mulf %6, %7 : vector<32x256xf32>
    %9 = arith.addf %5, %8 : vector<32x256xf32>
    %10 = arith.truncf %9 : vector<32x256xf32> to vector<32x256xbf16>
    %11 = vector.extract_strided_slice %2 {offsets = [0, 512], sizes = [32, 64], strides = [1, 1]} : vector<32x640xf32> to vector<32x64xf32>
    %12 = arith.truncf %11 : vector<32x64xf32> to vector<32x64xbf16>
    %13 = vector.extract_strided_slice %10 {offsets = [0, 0], sizes = [16, 32], strides = [1, 1]} : vector<32x256xbf16> to vector<16x32xbf16>
    %14 = vector.extract_strided_slice %10 {offsets = [16, 0], sizes = [16, 32], strides = [1, 1]} : vector<32x256xbf16> to vector<16x32xbf16>
    %15 = vector.extract_strided_slice %10 {offsets = [0, 32], sizes = [16, 32], strides = [1, 1]} : vector<32x256xbf16> to vector<16x32xbf16>
    %16 = vector.extract_strided_slice %10 {offsets = [16, 32], sizes = [16, 32], strides = [1, 1]} : vector<32x256xbf16> to vector<16x32xbf16>
    %17 = vector.extract_strided_slice %10 {offsets = [0, 64], sizes = [16, 32], strides = [1, 1]} : vector<32x256xbf16> to vector<16x32xbf16>
    %18 = vector.extract_strided_slice %10 {offsets = [16, 64], sizes = [16, 32], strides = [1, 1]} : vector<32x256xbf16> to vector<16x32xbf16>
    %19 = vector.extract_strided_slice %10 {offsets = [0, 96], sizes = [16, 32], strides = [1, 1]} : vector<32x256xbf16> to vector<16x32xbf16>
    %20 = vector.extract_strided_slice %10 {offsets = [16, 96], sizes = [16, 32], strides = [1, 1]} : vector<32x256xbf16> to vector<16x32xbf16>
    %21 = tpu.concatenate %13, %14, %15, %16, %17, %18, %19, %20 in 0 : vector<16x32xbf16>, vector<16x32xbf16>, vector<16x32xbf16>, vector<16x32xbf16>, vector<16x32xbf16>, vector<16x32xbf16>, vector<16x32xbf16>, vector<16x32xbf16> -> vector<128x32xbf16>
    %22 = vector.extract_strided_slice %10 {offsets = [0, 128], sizes = [16, 32], strides = [1, 1]} : vector<32x256xbf16> to vector<16x32xbf16>
    %23 = vector.extract_strided_slice %10 {offsets = [16, 128], sizes = [16, 32], strides = [1, 1]} : vector<32x256xbf16> to vector<16x32xbf16>
    %24 = vector.extract_strided_slice %10 {offsets = [0, 160], sizes = [16, 32], strides = [1, 1]} : vector<32x256xbf16> to vector<16x32xbf16>
    %25 = vector.extract_strided_slice %10 {offsets = [16, 160], sizes = [16, 32], strides = [1, 1]} : vector<32x256xbf16> to vector<16x32xbf16>
    %26 = tpu.concatenate %22, %23, %24, %25 in 0 : vector<16x32xbf16>, vector<16x32xbf16>, vector<16x32xbf16>, vector<16x32xbf16> -> vector<64x32xbf16>
    %27 = vector.extract_strided_slice %12 {offsets = [0, 0], sizes = [16, 32], strides = [1, 1]} : vector<32x64xbf16> to vector<16x32xbf16>
    %28 = vector.extract_strided_slice %12 {offsets = [16, 0], sizes = [16, 32], strides = [1, 1]} : vector<32x64xbf16> to vector<16x32xbf16>
    %29 = vector.extract_strided_slice %12 {offsets = [0, 32], sizes = [16, 32], strides = [1, 1]} : vector<32x64xbf16> to vector<16x32xbf16>
    %30 = vector.extract_strided_slice %12 {offsets = [16, 32], sizes = [16, 32], strides = [1, 1]} : vector<32x64xbf16> to vector<16x32xbf16>
    %31 = tpu.concatenate %27, %28, %29, %30 in 0 : vector<16x32xbf16>, vector<16x32xbf16>, vector<16x32xbf16>, vector<16x32xbf16> -> vector<64x32xbf16>
    %cst_7 = arith.constant dense<0.000000e+00> : vector<128x64xf32>
    %32 = tpu.matmul %21, %26, %cst_7 {dimension_numbers = #tpu.dot_dimension_numbers<[1], [1], [0], [0], [0, 0, 1, 0], [], []>} : vector<128x32xbf16>, vector<64x32xbf16>, vector<128x64xf32> -> vector<128x64xf32>
    %c0_8 = arith.constant 0 : index
    %c0_9 = arith.constant 0 : index
    %33 = vector.load %arg6[%c0_8, %c0_9] : memref<128x64xf32, #tpu.memory_space<vmem>>, vector<128x64xf32>
    %34 = arith.addf %32, %33 : vector<128x64xf32>
    %cst_10 = arith.constant dense<0xFF800000> : vector<128xf32>
    %35 = vector.multi_reduction <maximumf>, %34, %cst_10 [1] : vector<128x64xf32> to vector<128xf32>
    %36 = vector.shape_cast %35 : vector<128xf32> to vector<128x1xf32>
    %37 = vector.broadcast %36 : vector<128x1xf32> to vector<128x64xf32>
    %38 = arith.subf %34, %37 : vector<128x64xf32>
    %39 = math.exp %38 : vector<128x64xf32>
    %cst_11 = arith.constant dense<0.000000e+00> : vector<128xf32>
    %40 = vector.multi_reduction <add>, %39, %cst_11 [1] : vector<128x64xf32> to vector<128xf32>
    %41 = vector.shape_cast %40 : vector<128xf32> to vector<128x1xf32>
    %42 = tpu.reciprocal %41 {approx = true} : vector<128x1xf32> -> vector<128x1xf32>
    %43 = vector.broadcast %42 : vector<128x1xf32> to vector<128x64xf32>
    %44 = arith.mulf %39, %43 : vector<128x64xf32>
    %45 = arith.truncf %44 : vector<128x64xf32> to vector<128x64xbf16>
    %cst_12 = arith.constant dense<0.000000e+00> : vector<128x32xf32>
    %46 = tpu.matmul %45, %31, %cst_12 {dimension_numbers = #tpu.dot_dimension_numbers<[1], [0], [0], [1], [0, 0, 1, 1], [], []>} : vector<128x64xbf16>, vector<64x32xbf16>, vector<128x32xf32> -> vector<128x32xf32>
    %47 = vector.extract_strided_slice %46 {offsets = [0, 0], sizes = [16, 32], strides = [1, 1]} : vector<128x32xf32> to vector<16x32xf32>
    %c0_13 = arith.constant 0 : index
    %c0_14 = arith.constant 0 : index
    %48 = vector.load %arg8[%c0_13, %c0_14] : memref<32x128xf32, #tpu.memory_space<vmem>>, vector<16x32xf32>
    tpu.vector_store %arg8[%c0_13, %c0_14], %47 {strides = array<i32>} : memref<32x128xf32, #tpu.memory_space<vmem>>, vector<16x32xf32>,
    %49 = vector.extract_strided_slice %46 {offsets = [16, 0], sizes = [16, 32], strides = [1, 1]} : vector<128x32xf32> to vector<16x32xf32>
    %c16 = arith.constant 16 : index
    %c0_15 = arith.constant 0 : index
    %50 = vector.load %arg8[%c16, %c0_15] : memref<32x128xf32, #tpu.memory_space<vmem>>, vector<16x32xf32>
    tpu.vector_store %arg8[%c16, %c0_15], %49 {strides = array<i32>} : memref<32x128xf32, #tpu.memory_space<vmem>>, vector<16x32xf32>,
    %51 = vector.extract_strided_slice %46 {offsets = [32, 0], sizes = [16, 32], strides = [1, 1]} : vector<128x32xf32> to vector<16x32xf32>
    %c0_16 = arith.constant 0 : index
    %c32 = arith.constant 32 : index
    %52 = vector.load %arg8[%c0_16, %c32] : memref<32x128xf32, #tpu.memory_space<vmem>>, vector<16x32xf32>
    tpu.vector_store %arg8[%c0_16, %c32], %51 {strides = array<i32>} : memref<32x128xf32, #tpu.memory_space<vmem>>, vector<16x32xf32>,
    %53 = vector.extract_strided_slice %46 {offsets = [48, 0], sizes = [16, 32], strides = [1, 1]} : vector<128x32xf32> to vector<16x32xf32>
    %c16_17 = arith.constant 16 : index
    %c32_18 = arith.constant 32 : index
    %54 = vector.load %arg8[%c16_17, %c32_18] : memref<32x128xf32, #tpu.memory_space<vmem>>, vector<16x32xf32>
    tpu.vector_store %arg8[%c16_17, %c32_18], %53 {strides = array<i32>} : memref<32x128xf32, #tpu.memory_space<vmem>>, vector<16x32xf32>,
    %55 = vector.extract_strided_slice %46 {offsets = [64, 0], sizes = [16, 32], strides = [1, 1]} : vector<128x32xf32> to vector<16x32xf32>
    %c0_19 = arith.constant 0 : index
    %c64 = arith.constant 64 : index
    %56 = vector.load %arg8[%c0_19, %c64] : memref<32x128xf32, #tpu.memory_space<vmem>>, vector<16x32xf32>
    tpu.vector_store %arg8[%c0_19, %c64], %55 {strides = array<i32>} : memref<32x128xf32, #tpu.memory_space<vmem>>, vector<16x32xf32>,
    %57 = vector.extract_strided_slice %46 {offsets = [80, 0], sizes = [16, 32], strides = [1, 1]} : vector<128x32xf32> to vector<16x32xf32>
    %c16_20 = arith.constant 16 : index
    %c64_21 = arith.constant 64 : index
    %58 = vector.load %arg8[%c16_20, %c64_21] : memref<32x128xf32, #tpu.memory_space<vmem>>, vector<16x32xf32>
    tpu.vector_store %arg8[%c16_20, %c64_21], %57 {strides = array<i32>} : memref<32x128xf32, #tpu.memory_space<vmem>>, vector<16x32xf32>,
    %59 = vector.extract_strided_slice %46 {offsets = [96, 0], sizes = [16, 32], strides = [1, 1]} : vector<128x32xf32> to vector<16x32xf32>
    %c0_22 = arith.constant 0 : index
    %c96 = arith.constant 96 : index
    %60 = vector.load %arg8[%c0_22, %c96] : memref<32x128xf32, #tpu.memory_space<vmem>>, vector<16x32xf32>
    tpu.vector_store %arg8[%c0_22, %c96], %59 {strides = array<i32>} : memref<32x128xf32, #tpu.memory_space<vmem>>, vector<16x32xf32>,
    %61 = vector.extract_strided_slice %46 {offsets = [112, 0], sizes = [16, 32], strides = [1, 1]} : vector<128x32xf32> to vector<16x32xf32>
    %c16_23 = arith.constant 16 : index
    %c96_24 = arith.constant 96 : index
    %62 = vector.load %arg8[%c16_23, %c96_24] : memref<32x128xf32, #tpu.memory_space<vmem>>, vector<16x32xf32>
    tpu.vector_store %arg8[%c16_23, %c96_24], %61 {strides = array<i32>} : memref<32x128xf32, #tpu.memory_space<vmem>>, vector<16x32xf32>,
    %c0_25 = arith.constant 0 : index
    %c0_26 = arith.constant 0 : index
    %63 = vector.load %arg8[%c0_25, %c0_26] : memref<32x128xf32, #tpu.memory_space<vmem>>, vector<32x128xf32>
    %64 = arith.truncf %63 : vector<32x128xf32> to vector<32x128xbf16>
    %c0_27 = arith.constant 0 : index
    %c0_28 = arith.constant 0 : index
    %65 = vector.load %arg3[%c0_27, %c0_28] : memref<128x128xbf16, #tpu.memory_space<vmem>>, vector<128x128xbf16>
    %cst_29 = arith.constant dense<0.000000e+00> : vector<32x128xf32>
    %66 = tpu.matmul %64, %65, %cst_29 {dimension_numbers = #tpu.dot_dimension_numbers<[1], [0], [0], [1], [0, 0, 1, 1], [], []>} : vector<32x128xbf16>, vector<128x128xbf16>, vector<32x128xf32> -> vector<32x128xf32>
    %c0_30 = arith.constant 0 : index
    %c0_31 = arith.constant 0 : index
    %67 = vector.load %arg7[%c0_30, %c0_31] : memref<32x128xf32, #tpu.memory_space<vmem>>, vector<32x128xf32>
    tpu.vector_store %arg7[%c0_30, %c0_31], %66 {strides = array<i32>} : memref<32x128xf32, #tpu.memory_space<vmem>>, vector<32x128xf32>,
    return
  }
  func.func @transform_0(%arg0: i32) -> (i32, i32) {
    %c0_i32 = arith.constant 0 : i32
    %c0_i32_0 = arith.constant 0 : i32
    %c0_i32_1 = arith.constant 0 : i32
    return %c0_i32, %c0_i32_0 : i32, i32
  }
  func.func @transform_1(%arg0: i32) -> (i32, i32) {
    %c0_i32 = arith.constant 0 : i32
    %c0_i32_0 = arith.constant 0 : i32
    %c0_i32_1 = arith.constant 0 : i32
    return %c0_i32, %c0_i32_0 : i32, i32
  }
  func.func @transform_2(%arg0: i32) -> (i32, i32) {
    %c0_i32 = arith.constant 0 : i32
    %c0_i32_0 = arith.constant 0 : i32
    %c0_i32_1 = arith.constant 0 : i32
    return %c0_i32, %c0_i32_0 : i32, i32
  }
  func.func @transform_3(%arg0: i32) -> (i32, i32) {
    %c0_i32 = arith.constant 0 : i32
    %c0_i32_0 = arith.constant 0 : i32
    %c0_i32_1 = arith.constant 0 : i32
    return %c0_i32, %c0_i32_0 : i32, i32
  }
  func.func @transform_4(%arg0: i32) -> (i32, i32) {
    %c0_i32 = arith.constant 0 : i32
    %c0_i32_0 = arith.constant 0 : i32
    %c0_i32_1 = arith.constant 0 : i32
    return %c0_i32, %c0_i32_0 : i32, i32
  }
  func.func @transform_5(%arg0: i32) -> (i32, i32) {
    %c0_i32 = arith.constant 0 : i32
    %c0_i32_0 = arith.constant 0 : i32
    %c0_i32_1 = arith.constant 0 : i32
    return %c0_i32, %c0_i32_0 : i32, i32
  }
  func.func @transform_6(%arg0: i32) -> (i32, i32) {
    %c0_i32 = arith.constant 0 : i32
    %c0_i32_0 = arith.constant 0 : i32
    %c0_i32_1 = arith.constant 0 : i32
    return %c0_i32, %c0_i32_0 : i32, i32
  }
}

</mosaic_0001>

<llo_original>
// kernel: rotary_attention.1
$region0: #{rotary_attention.1}
  #allocation0 [shape = 'u32[]', space=smem, size = 0x4, offset = 0x4, fixed_abs, tag = 'smem constant byte address 0x4 - core index']
  #allocation1 [shape = 'u32[144,128]{1,0:T(1,128)}', space=vmem, size = 0x12000, scoped, tag = 'internal scratch']
  #allocation2 [shape = 'f32[32,128]{1,0:T(8,128)}', space=vmem, size = 0x4000, scoped, tag = 'scratch operand']
  %s0 = inlined_call_operand.vmem [shape: bf16[32,128], index: 0, kind: input, shape index: {}]
  %s1 = inlined_call_operand.hbm [shape: bf16[128,640], index: 1, kind: input, shape index: {}]
  %s2 = inlined_call_operand.vmem [shape: bf16[128,128], index: 2, kind: input, shape index: {}]
  %s3 = inlined_call_operand.vmem [shape: f32[32,256], index: 3, kind: input, shape index: {}]
  %s4 = inlined_call_operand.vmem [shape: f32[32,256], index: 4, kind: input, shape index: {}]
  %s5 = inlined_call_operand.vmem [shape: f32[128,64], index: 5, kind: input, shape index: {}]
  %s6 = inlined_call_operand.hbm [shape: f32[32,128], index: 6, kind: output, shape index: {}]
  %s7 = sld [smem:[#allocation0]]
  $region38: #{rotary_attention.1} parent=0
    _
  %s9 = ssub.s32 1, %s7
  %s10 = scalar_select 0, %s9, %s7
  $region1: #{rotary_attention.1} parent=0
    #allocation3 [shape = 'u8[163840]{0}', space=vmem, size = 0x28000, scoped, tag = 'input window, operand 1, single buffered']
    #allocation4 [shape = 's32[1]{0}', space=sflag, size = 0x4, scoped, tag = 'scoped memory for rotary_attention.1']
    #allocation5 [shape = 's32[1]{0}', space=sflag, size = 0x4, scoped, tag = 'scoped memory for rotary_attention.1']
    #allocation6 [shape = 'u8[16384]{0}', space=vmem, size = 0x4000, scoped, tag = 'output window, operand 0, single buffered']
    %11 = vsyncpa [#allocation4], 0
    %12 = vsyncpa [#allocation5], 0
    // Predicated region
    $region2: #{rotary_attention.1} parent=1 // pred_check
      _
    $region3: #{rotary_attention.1} parent=1 // pred_check_branch
      %14 = sbr.rel (0) target = $region5
    $region4: #{rotary_attention.1} parent=1 // pred_region
      _
    $region5: #{rotary_attention.1} parent=1 // pred_fallthru
      _
    // Predicated region
    $region6: #{rotary_attention.1} parent=1 // pred_check
      _
    $region7: #{rotary_attention.1} parent=1 // pred_check_branch
      %16 = sbr.rel (0) target = $region9
    $region8: #{rotary_attention.1} parent=1 // pred_region
      %s18 = ssub.s32 5120, 5120
      %19 = vsyncadd [#allocation4], %s18
      %s20 = sshll.u32 [#allocation3], 4
      %s21 = int_to_ptr.vmem [resolvable:$true] %s20
      %26 = dma.hbm_to_vmem [thread:$0]  %s1, 5120, %s21, [#allocation4], 320, 320, 20
    $region9: #{rotary_attention.1} parent=1 // pred_fallthru
      _
    // Predicated region
    $region10: #{rotary_attention.1} parent=1 // pred_check
      _
    $region11: #{rotary_attention.1} parent=1 // pred_check_branch
      %28 = sbr.rel (0) target = $region13
    $region12: #{rotary_attention.1} parent=1 // pred_region
      _
    $region13: #{rotary_attention.1} parent=1 // pred_fallthru
      _
    // Predicated region
    $region14: #{rotary_attention.1} parent=1 // pred_check
      _
    $region15: #{rotary_attention.1} parent=1 // pred_check_branch
      %30 = sbr.rel (0) target = $region17
    $region16: #{rotary_attention.1} parent=1 // pred_region
      _
    $region17: #{rotary_attention.1} parent=1 // pred_fallthru
      _
    // Predicated region
    $region18: #{rotary_attention.1} parent=1 // pred_check
      _
    $region19: #{rotary_attention.1} parent=1 // pred_check_branch
      %32 = sbr.rel (0) target = $region21
    $region20: #{rotary_attention.1} parent=1 // pred_region
      _
    $region21: #{rotary_attention.1} parent=1 // pred_fallthru
      _
    // Predicated region
    $region22: #{rotary_attention.1} parent=1 // pred_check
      _
    $region23: #{rotary_attention.1} parent=1 // pred_check_branch
      %34 = sbr.rel (0) target = $region25
    $region24: #{rotary_attention.1} parent=1 // pred_region
      _
    $region25: #{rotary_attention.1} parent=1 // pred_fallthru
      _
    // Predicated region
    $region26: #{rotary_attention.1} parent=1 // pred_check
      _
    $region27: #{rotary_attention.1} parent=1 // pred_check_branch
      %36 = sbr.rel (0) target = $region29
    $region28: #{rotary_attention.1} parent=1 // pred_region
      %37 = dma.done [#allocation4], 5120
    $region29: #{rotary_attention.1} parent=1 // pred_fallthru
      _
    %v39 = vld [vmem:[%s0] sm:$0xf]
    %v40 = vld [vmem:[%s0 + $0x4] sm:$0xf]
    %v41 = vld [vmem:[%s0 + $0x8] sm:$0xf]
    %v42 = vld [vmem:[%s0 + $0xc] sm:$0xf]
    %v43 = vld [vmem:[#allocation3] sm:$0xff]
    %v44 = vld [vmem:[#allocation3 + $0x8] sm:$0xff]
    %v45 = vld [vmem:[#allocation3 + $0x10] sm:$0xf]
    %v46 = vld [vmem:[#allocation3 + $0x14] sm:$0xff]
    %v47 = vld [vmem:[#allocation3 + $0x1c] sm:$0xff]
    %v48 = vld [vmem:[#allocation3 + $0x24] sm:$0xf]
    %v49 = vld [vmem:[#allocation3 + $0x28] sm:$0xff]
    %v50 = vld [vmem:[#allocation3 + $0x30] sm:$0xff]
    %v51 = vld [vmem:[#allocation3 + $0x38] sm:$0xf]
    %v52 = vld [vmem:[#allocation3 + $0x3c] sm:$0xff]
    %v53 = vld [vmem:[#allocation3 + $0x44] sm:$0xff]
    %v54 = vld [vmem:[#allocation3 + $0x4c] sm:$0xf]
    %v55 = vld [vmem:[#allocation3 + $0x50] sm:$0xff]
    %v56 = vld [vmem:[#allocation3 + $0x58] sm:$0xff]
    %v57 = vld [vmem:[#allocation3 + $0x60] sm:$0xf]
    %v58 = vld [vmem:[#allocation3 + $0x64] sm:$0xff]
    %v59 = vld [vmem:[#allocation3 + $0x6c] sm:$0xff]
    %v60 = vld [vmem:[#allocation3 + $0x74] sm:$0xf]
    %v61 = vld [vmem:[#allocation3 + $0x78] sm:$0xff]
    %v62 = vld [vmem:[#allocation3 + $0x80] sm:$0xff]
    %v63 = vld [vmem:[#allocation3 + $0x88] sm:$0xf]
    %v64 = vld [vmem:[#allocation3 + $0x8c] sm:$0xff]
    %v65 = vld [vmem:[#allocation3 + $0x94] sm:$0xff]
    %v66 = vld [vmem:[#allocation3 + $0x9c] sm:$0xf]
    %v67 = vld [vmem:[#allocation3 + $0xa0] sm:$0xff]
    %v68 = vld [vmem:[#allocation3 + $0xa8] sm:$0xff]
    %v69 = vld [vmem:[#allocation3 + $0xb0] sm:$0xf]
    %v70 = vld [vmem:[#allocation3 + $0xb4] sm:$0xff]
    %v71 = vld [vmem:[#allocation3 + $0xbc] sm:$0xff]
    %v72 = vld [vmem:[#allocation3 + $0xc4] sm:$0xf]
    %v73 = vld [vmem:[#allocation3 + $0xc8] sm:$0xff]
    %v74 = vld [vmem:[#allocation3 + $0xd0] sm:$0xff]
    %v75 = vld [vmem:[#allocation3 + $0xd8] sm:$0xf]
    %v76 = vld [vmem:[#allocation3 + $0xdc] sm:$0xff]
    %v77 = vld [vmem:[#allocation3 + $0xe4] sm:$0xff]
    %v78 = vld [vmem:[#allocation3 + $0xec] sm:$0xf]
    %v79 = vld [vmem:[#allocation3 + $0xf0] sm:$0xff]
    %v80 = vld [vmem:[#allocation3 + $0xf8] sm:$0xff]
    %v81 = vld [vmem:[#allocation3 + $0x100] sm:$0xf]
    %v82 = vld [vmem:[#allocation3 + $0x104] sm:$0xff]
    %v83 = vld [vmem:[#allocation3 + $0x10c] sm:$0xff]
    %v84 = vld [vmem:[#allocation3 + $0x114] sm:$0xf]
    %v85 = vld [vmem:[#allocation3 + $0x118] sm:$0xff]
    %v86 = vld [vmem:[#allocation3 + $0x120] sm:$0xff]
    %v87 = vld [vmem:[#allocation3 + $0x128] sm:$0xf]
    %v88 = vld [vmem:[#allocation3 + $0x12c] sm:$0xff]
    %v89 = vld [vmem:[#allocation3 + $0x134] sm:$0xff]
    %v90 = vld [vmem:[#allocation3 + $0x13c] sm:$0xf]
    %v95 = vunpack.c.l.b16 %v39
    %v96 = vunpack.c.l.b16 %v40
    %v97 = vunpack.c.l.b16 %v41
    %v98 = vunpack.c.l.b16 %v42
    %v99 = vpack.c.b16 %v96, %v95
    %v100 = vpack.c.b16 %v98, %v97
    %v151 = vunpack.c.l.b16 %v43
    %v152 = vunpack.c.h.b16 %v43
    %v153 = vunpack.c.l.b16 %v44
    %v154 = vunpack.c.h.b16 %v44
    %v155 = vunpack.c.l.b16 %v45
    %v156 = vunpack.c.l.b16 %v46
    %v157 = vunpack.c.h.b16 %v46
    %v158 = vunpack.c.l.b16 %v47
    %v159 = vunpack.c.h.b16 %v47
    %v160 = vunpack.c.l.b16 %v48
    %v161 = vunpack.c.l.b16 %v49
    %v162 = vunpack.c.h.b16 %v49
    %v163 = vunpack.c.l.b16 %v50
    %v164 = vunpack.c.h.b16 %v50
    %v165 = vunpack.c.l.b16 %v51
    %v166 = vunpack.c.l.b16 %v52
    %v167 = vunpack.c.h.b16 %v52
    %v168 = vunpack.c.l.b16 %v53
    %v169 = vunpack.c.h.b16 %v53
    %v170 = vunpack.c.l.b16 %v54
    %v171 = vunpack.c.l.b16 %v55
    %v172 = vunpack.c.h.b16 %v55
    %v173 = vunpack.c.l.b16 %v56
    %v174 = vunpack.c.h.b16 %v56
    %v175 = vunpack.c.l.b16 %v57
    %v176 = vunpack.c.l.b16 %v58
    %v177 = vunpack.c.h.b16 %v58
    %v178 = vunpack.c.l.b16 %v59
    %v179 = vunpack.c.h.b16 %v59
    %v180 = vunpack.c.l.b16 %v60
    %v181 = vunpack.c.l.b16 %v61
    %v182 = vunpack.c.h.b16 %v61
    %v183 = vunpack.c.l.b16 %v62
    %v184 = vunpack.c.h.b16 %v62
    %v185 = vunpack.c.l.b16 %v63
    %v186 = vunpack.c.l.b16 %v64
    %v187 = vunpack.c.h.b16 %v64
    %v188 = vunpack.c.l.b16 %v65
    %v189 = vunpack.c.h.b16 %v65
    %v190 = vunpack.c.l.b16 %v66
    %v191 = vunpack.c.l.b16 %v67
    %v192 = vunpack.c.h.b16 %v67
    %v193 = vunpack.c.l.b16 %v68
    %v194 = vunpack.c.h.b16 %v68
    %v195 = vunpack.c.l.b16 %v69
    %v196 = vunpack.c.l.b16 %v70
    %v197 = vunpack.c.h.b16 %v70
    %v198 = vunpack.c.l.b16 %v71
    %v199 = vunpack.c.h.b16 %v71
    %v200 = vunpack.c.l.b16 %v72
    %v201 = vunpack.c.l.b16 %v73
    %v202 = vunpack.c.h.b16 %v73
    %v203 = vunpack.c.l.b16 %v74
    %v204 = vunpack.c.h.b16 %v74
    %v205 = vunpack.c.l.b16 %v75
    %v206 = vunpack.c.l.b16 %v76
    %v207 = vunpack.c.h.b16 %v76
    %v208 = vunpack.c.l.b16 %v77
    %v209 = vunpack.c.h.b16 %v77
    %v210 = vunpack.c.l.b16 %v78
    %v211 = vunpack.c.l.b16 %v79
    %v212 = vunpack.c.h.b16 %v79
    %v213 = vunpack.c.l.b16 %v80
    %v214 = vunpack.c.h.b16 %v80
    %v215 = vunpack.c.l.b16 %v81
    %v216 = vunpack.c.l.b16 %v82
    %v217 = vunpack.c.h.b16 %v82
    %v218 = vunpack.c.l.b16 %v83
    %v219 = vunpack.c.h.b16 %v83
    %v220 = vunpack.c.l.b16 %v84
    %v221 = vunpack.c.l.b16 %v85
    %v222 = vunpack.c.h.b16 %v85
    %v223 = vunpack.c.l.b16 %v86
    %v224 = vunpack.c.h.b16 %v86
    %v225 = vunpack.c.l.b16 %v87
    %v226 = vunpack.c.l.b16 %v88
    %v227 = vunpack.c.h.b16 %v88
    %v228 = vunpack.c.l.b16 %v89
    %v229 = vunpack.c.h.b16 %v89
    %v230 = vunpack.c.l.b16 %v90
    %v231 = vpack.c.b16 %v156, %v151
    %v232 = vpack.c.b16 %v157, %v152
    %v233 = vpack.c.b16 %v158, %v153
    %v234 = vpack.c.b16 %v159, %v154
    %v235 = vpack.c.b16 %v160, %v155
    %v236 = vpack.c.b16 %v166, %v161
    %v237 = vpack.c.b16 %v167, %v162
    %v238 = vpack.c.b16 %v168, %v163
    %v239 = vpack.c.b16 %v169, %v164
    %v240 = vpack.c.b16 %v170, %v165
    %v241 = vpack.c.b16 %v176, %v171
    %v242 = vpack.c.b16 %v177, %v172
    %v243 = vpack.c.b16 %v178, %v173
    %v244 = vpack.c.b16 %v179, %v174
    %v245 = vpack.c.b16 %v180, %v175
    %v246 = vpack.c.b16 %v186, %v181
    %v247 = vpack.c.b16 %v187, %v182
    %v248 = vpack.c.b16 %v188, %v183
    %v249 = vpack.c.b16 %v189, %v184
    %v250 = vpack.c.b16 %v190, %v185
    %v251 = vpack.c.b16 %v196, %v191
    %v252 = vpack.c.b16 %v197, %v192
    %v253 = vpack.c.b16 %v198, %v193
    %v254 = vpack.c.b16 %v199, %v194
    %v255 = vpack.c.b16 %v200, %v195
    %v256 = vpack.c.b16 %v206, %v201
    %v257 = vpack.c.b16 %v207, %v202
    %v258 = vpack.c.b16 %v208, %v203
    %v259 = vpack.c.b16 %v209, %v204
    %v260 = vpack.c.b16 %v210, %v205
    %v261 = vpack.c.b16 %v216, %v211
    %v262 = vpack.c.b16 %v217, %v212
    %v263 = vpack.c.b16 %v218, %v213
    %v264 = vpack.c.b16 %v219, %v214
    %v265 = vpack.c.b16 %v220, %v215
    %v266 = vpack.c.b16 %v226, %v221
    %v267 = vpack.c.b16 %v227, %v222
    %v268 = vpack.c.b16 %v228, %v223
    %v269 = vpack.c.b16 %v229, %v224
    %v270 = vpack.c.b16 %v230, %v225
    %311 = vmatprep.subr.bf16.mxu0 %v232
    %312 = vmatpush1.bf16.msra.mxu0 %v231
    %313 = vmatprep.subr.bf16.mxu0 %v237
    %314 = vmatpush1.bf16.msra.mxu0 %v236
    %315 = vmatprep.subr.bf16.mxu0 %v242
    %316 = vmatpush1.bf16.msra.mxu0 %v241
    %317 = vmatprep.subr.bf16.mxu0 %v247
    %318 = vmatpush1.bf16.msra.mxu0 %v246
    %319 = vmatprep.subr.bf16.mxu0 %v252
    %320 = vmatpush1.bf16.msra.mxu0 %v251
    %321 = vmatprep.subr.bf16.mxu0 %v257
    %322 = vmatpush1.bf16.msra.mxu0 %v256
    %323 = vmatprep.subr.bf16.mxu0 %v262
    %324 = vmatpush1.bf16.msra.mxu0 %v261
    %325 = vmatprep.subr.bf16.mxu0 %v267
    %326 = vmatpush1.bf16.msra.mxu0 %v266
    %327 = vmatprep.subr.bf16.mxu0 0
    %328 = vmatpush1.bf16.msra.mxu0 0
    %329 = vmatprep.subr.bf16.mxu0 0
    %330 = vmatpush1.bf16.msra.mxu0 0
    %331 = vmatprep.subr.bf16.mxu0 0
    %332 = vmatpush1.bf16.msra.mxu0 0
    %333 = vmatprep.subr.bf16.mxu0 0
    %334 = vmatpush1.bf16.msra.mxu0 0
    %335 = vmatprep.subr.bf16.mxu0 0
    %336 = vmatpush1.bf16.msra.mxu0 0
    %337 = vmatprep.subr.bf16.mxu0 0
    %338 = vmatpush1.bf16.msra.mxu0 0
    %339 = vmatprep.subr.bf16.mxu0 0
    %340 = vmatpush1.bf16.msra.mxu0 0
    %341 = vmatprep.subr.bf16.mxu0 0
    %342 = vmatpush1.bf16.msra.mxu0 0
    %343 = vmatprep.mubr.bf16.mxu0 0
    %344 = vmatmul.mubr.bf16.gmra.mrb[0].mxu0 %v99
    %v345 = vpop.f32.mrb[0].mxu0
    %v346 = vadd.f32 0.0, %v345
    %v347 = vpop.f32.mrb[0].mxu0
    %v348 = vadd.f32 0.0, %v347
    %v349 = vpop.f32.mrb[0].mxu0
    %v350 = vadd.f32 0.0, %v349
    %v351 = vpop.f32.mrb[0].mxu0
    %v352 = vadd.f32 0.0, %v351
    %353 = vmatprep.mubr.bf16.mxu0 0
    %354 = vmatmul.mubr.bf16.gmra.mrb[0].mxu0 %v100
    %v355 = vpop.f32.mrb[0].mxu0
    %v356 = vadd.f32 0.0, %v355
    %v357 = vpop.f32.mrb[0].mxu0
    %v358 = vadd.f32 0.0, %v357
    %v359 = vpop.f32.mrb[0].mxu0
    %v360 = vadd.f32 0.0, %v359
    %v361 = vpop.f32.mrb[0].mxu0
    %v362 = vadd.f32 0.0, %v361
    %363 = vdwg.mxu0
    %364 = vmatprep.subr.bf16.mxu0 %v234
    %365 = vmatpush1.bf16.msra.mxu0 %v233
    %366 = vmatprep.subr.bf16.mxu0 %v239
    %367 = vmatpush1.bf16.msra.mxu0 %v238
    %368 = vmatprep.subr.bf16.mxu0 %v244
    %369 = vmatpush1.bf16.msra.mxu0 %v243
    %370 = vmatprep.subr.bf16.mxu0 %v249
    %371 = vmatpush1.bf16.msra.mxu0 %v248
    %372 = vmatprep.subr.bf16.mxu0 %v254
    %373 = vmatpush1.bf16.msra.mxu0 %v253
    %374 = vmatprep.subr.bf16.mxu0 %v259
    %375 = vmatpush1.bf16.msra.mxu0 %v258
    %376 = vmatprep.subr.bf16.mxu0 %v264
    %377 = vmatpush1.bf16.msra.mxu0 %v263
    %378 = vmatprep.subr.bf16.mxu0 %v269
    %379 = vmatpush1.bf16.msra.mxu0 %v268
    %380 = vmatprep.subr.bf16.mxu0 0
    %381 = vmatpush1.bf16.msra.mxu0 0
    %382 = vmatprep.subr.bf16.mxu0 0
    %383 = vmatpush1.bf16.msra.mxu0 0
    %384 = vmatprep.subr.bf16.mxu0 0
    %385 = vmatpush1.bf16.msra.mxu0 0
    %386 = vmatprep.subr.bf16.mxu0 0
    %387 = vmatpush1.bf16.msra.mxu0 0
    %388 = vmatprep.subr.bf16.mxu0 0
    %389 = vmatpush1.bf16.msra.mxu0 0
    %390 = vmatprep.subr.bf16.mxu0 0
    %391 = vmatpush1.bf16.msra.mxu0 0
    %392 = vmatprep.subr.bf16.mxu0 0
    %393 = vmatpush1.bf16.msra.mxu0 0
    %394 = vmatprep.subr.bf16.mxu0 0
    %395 = vmatpush1.bf16.msra.mxu0 0
    %396 = vmatprep.mubr.bf16.mxu0 0
    %397 = vmatmul.mubr.bf16.gmra.mrb[0].mxu0 %v99
    %v398 = vpop.f32.mrb[0].mxu0
    %v399 = vadd.f32 0.0, %v398
    %v400 = vpop.f32.mrb[0].mxu0
    %v401 = vadd.f32 0.0, %v400
    %v402 = vpop.f32.mrb[0].mxu0
    %v403 = vadd.f32 0.0, %v402
    %v404 = vpop.f32.mrb[0].mxu0
    %v405 = vadd.f32 0.0, %v404
    %406 = vmatprep.mubr.bf16.mxu0 0
    %407 = vmatmul.mubr.bf16.gmra.mrb[0].mxu0 %v100
    %v408 = vpop.f32.mrb[0].mxu0
    %v409 = vadd.f32 0.0, %v408
    %v410 = vpop.f32.mrb[0].mxu0
    %v411 = vadd.f32 0.0, %v410
    %v412 = vpop.f32.mrb[0].mxu0
    %v413 = vadd.f32 0.0, %v412
    %v414 = vpop.f32.mrb[0].mxu0
    %v415 = vadd.f32 0.0, %v414
    %416 = vdwg.mxu0
    %417 = vmatprep.subr.bf16.mxu0 0
    %418 = vmatpush1.bf16.msra.mxu0 %v235
    %419 = vmatprep.subr.bf16.mxu0 0
    %420 = vmatpush1.bf16.msra.mxu0 %v240
    %421 = vmatprep.subr.bf16.mxu0 0
    %422 = vmatpush1.bf16.msra.mxu0 %v245
    %423 = vmatprep.subr.bf16.mxu0 0
    %424 = vmatpush1.bf16.msra.mxu0 %v250
    %425 = vmatprep.subr.bf16.mxu0 0
    %426 = vmatpush1.bf16.msra.mxu0 %v255
    %427 = vmatprep.subr.bf16.mxu0 0
    %428 = vmatpush1.bf16.msra.mxu0 %v260
    %429 = vmatprep.subr.bf16.mxu0 0
    %430 = vmatpush1.bf16.msra.mxu0 %v265
    %431 = vmatprep.subr.bf16.mxu0 0
    %432 = vmatpush1.bf16.msra.mxu0 %v270
    %433 = vmatprep.subr.bf16.mxu0 0
    %434 = vmatpush1.bf16.msra.mxu0 0
    %435 = vmatprep.subr.bf16.mxu0 0
    %436 = vmatpush1.bf16.msra.mxu0 0
    %437 = vmatprep.subr.bf16.mxu0 0
    %438 = vmatpush1.bf16.msra.mxu0 0
    %439 = vmatprep.subr.bf16.mxu0 0
    %440 = vmatpush1.bf16.msra.mxu0 0
    %441 = vmatprep.subr.bf16.mxu0 0
    %442 = vmatpush1.bf16.msra.mxu0 0
    %443 = vmatprep.subr.bf16.mxu0 0
    %444 = vmatpush1.bf16.msra.mxu0 0
    %445 = vmatprep.subr.bf16.mxu0 0
    %446 = vmatpush1.bf16.msra.mxu0 0
    %447 = vmatprep.subr.bf16.mxu0 0
    %448 = vmatpush1.bf16.msra.mxu0 0
    %449 = vmatprep.mubr.bf16.mxu0 0
    %450 = vmatmul.mubr.bf16.gmra.mrb[0].mxu0 %v99
    %v451 = vpop.f32.mrb[0].mxu0
    %v452 = vadd.f32 0.0, %v451
    %v453 = vpop.f32.mrb[0].mxu0
    %v454 = vpop.f32.mrb[0].mxu0
    %v455 = vadd.f32 0.0, %v454
    %v456 = vpop.f32.mrb[0].mxu0
    %457 = vmatprep.mubr.bf16.mxu0 0
    %458 = vmatmul.mubr.bf16.gmra.mrb[0].mxu0 %v100
    %v459 = vpop.f32.mrb[0].mxu0
    %v460 = vadd.f32 0.0, %v459
    %v461 = vpop.f32.mrb[0].mxu0
    %v462 = vpop.f32.mrb[0].mxu0
    %v463 = vadd.f32 0.0, %v462
    %v464 = vpop.f32.mrb[0].mxu0
    %465 = vdwg.mxu0
    %v466 = vld [vmem:[%s3] sm:$0xff]
    %v467 = vld [vmem:[%s3 + $0x8] sm:$0xff]
    %v468 = vld [vmem:[%s3 + $0x10] sm:$0xff]
    %v469 = vld [vmem:[%s3 + $0x18] sm:$0xff]
    %v470 = vld [vmem:[%s3 + $0x20] sm:$0xff]
    %v471 = vld [vmem:[%s3 + $0x28] sm:$0xff]
    %v472 = vld [vmem:[%s3 + $0x30] sm:$0xff]
    %v473 = vld [vmem:[%s3 + $0x38] sm:$0xff]
    %v474 = vmul.f32 %v346, %v466
    %v475 = vmul.f32 %v348, %v467
    %v476 = vmul.f32 %v350, %v468
    %v477 = vmul.f32 %v352, %v469
    %v478 = vmul.f32 %v356, %v470
    %v479 = vmul.f32 %v358, %v471
    %v480 = vmul.f32 %v360, %v472
    %v481 = vmul.f32 %v362, %v473
    %v482 = vld [vmem:[%s4] sm:$0xff]
    %v483 = vld [vmem:[%s4 + $0x8] sm:$0xff]
    %v484 = vld [vmem:[%s4 + $0x10] sm:$0xff]
    %v485 = vld [vmem:[%s4 + $0x18] sm:$0xff]
    %v486 = vld [vmem:[%s4 + $0x20] sm:$0xff]
    %v487 = vld [vmem:[%s4 + $0x28] sm:$0xff]
    %v488 = vld [vmem:[%s4 + $0x30] sm:$0xff]
    %v489 = vld [vmem:[%s4 + $0x38] sm:$0xff]
    %v490 = vmul.f32 %v399, %v482
    %v491 = vmul.f32 %v401, %v483
    %v492 = vmul.f32 %v403, %v484
    %v493 = vmul.f32 %v405, %v485
    %v494 = vmul.f32 %v409, %v486
    %v495 = vmul.f32 %v411, %v487
    %v496 = vmul.f32 %v413, %v488
    %v497 = vmul.f32 %v415, %v489
    %v498 = vadd.f32 %v474, %v490
    %v499 = vadd.f32 %v475, %v491
    %v500 = vadd.f32 %v476, %v492
    %v501 = vadd.f32 %v477, %v493
    %v502 = vadd.f32 %v478, %v494
    %v503 = vadd.f32 %v479, %v495
    %v504 = vadd.f32 %v480, %v496
    %v505 = vadd.f32 %v481, %v497
    %v506 = vpack.c.bf16 %v500, %v498
    %v507 = vpack.c.bf16 %v501, %v499
    %v508 = vpack.c.bf16 %v504, %v502
    %v509 = vpack.c.bf16 %v505, %v503
    %v510 = vpack.c.bf16 %v455, %v452
    %v511 = vpack.c.bf16 %v463, %v460
    %513 = vrot.lane.b32.xlu0 %v506, 96
    %v514 = vpop.permute.xlu0 %513
    %516 = vrot.lane.b32.xlu0 %v508, 96
    %v517 = vpop.permute.xlu0 %516
    %518 = vrot.lane.b32.xlu0 %v506, 64
    %v519 = vpop.permute.xlu0 %518
    %520 = vrot.lane.b32.xlu0 %v508, 64
    %v521 = vpop.permute.xlu0 %520
    %522 = vrot.lane.b32.xlu0 %v506, 32
    %v523 = vpop.permute.xlu0 %522
    %524 = vrot.lane.b32.xlu0 %v508, 32
    %v525 = vpop.permute.xlu0 %524
    %527 = vrot.lane.b32.xlu0 %v507, 96
    %v528 = vpop.permute.xlu0 %527
    %530 = vrot.lane.b32.xlu0 %v509, 96
    %v531 = vpop.permute.xlu0 %530
    %533 = vrot.lane.b32.xlu0 %v510, 96
    %v534 = vpop.permute.xlu0 %533
    %537 = vrot.lane.b32.xlu0 %v511, 96
    %v538 = vpop.permute.xlu0 %537
    %v540 = vld [vmem:[%s5] sm:$0xff]
    %v541 = vld [vmem:[%s5 + $0x8] sm:$0xff]
    %v542 = vld [vmem:[%s5 + $0x10] sm:$0xff]
    %v543 = vld [vmem:[%s5 + $0x18] sm:$0xff]
    %v544 = vld [vmem:[%s5 + $0x20] sm:$0xff]
    %v545 = vld [vmem:[%s5 + $0x28] sm:$0xff]
    %v546 = vld [vmem:[%s5 + $0x30] sm:$0xff]
    %v547 = vld [vmem:[%s5 + $0x38] sm:$0xff]
    %v548 = vld [vmem:[%s5 + $0x40] sm:$0xff]
    %v549 = vld [vmem:[%s5 + $0x48] sm:$0xff]
    %v550 = vld [vmem:[%s5 + $0x50] sm:$0xff]
    %v551 = vld [vmem:[%s5 + $0x58] sm:$0xff]
    %v552 = vld [vmem:[%s5 + $0x60] sm:$0xff]
    %v553 = vld [vmem:[%s5 + $0x68] sm:$0xff]
    %v554 = vld [vmem:[%s5 + $0x70] sm:$0xff]
    %v555 = vld [vmem:[%s5 + $0x78] sm:$0xff]
    %vm556 = vcmask 261120
    %v558 = vsel %vm556, %v506, 0
    %v561 = vsel %vm556, %v508, 0
    %v564 = vsel %vm556, %v514, 0
    %v567 = vsel %vm556, %v517, 0
    %v570 = vsel %vm556, %v519, 0
    %v573 = vsel %vm556, %v521, 0
    %v576 = vsel %vm556, %v523, 0
    %v579 = vsel %vm556, %v525, 0
    %v582 = vsel %vm556, %v507, 0
    %v585 = vsel %vm556, %v509, 0
    %v588 = vsel %vm556, %v528, 0
    %v591 = vsel %vm556, %v531, 0
    %593 = vmatprep.subr.bf16.mxu0 0
    %594 = vmatpush1.bf16.xpose.msra.mxu0 %v582
    %595 = vmatprep.subr.bf16.mxu0 0
    %596 = vmatpush1.bf16.xpose.msra.mxu0 %v585
    %597 = vmatprep.subr.bf16.mxu0 0
    %598 = vmatpush1.bf16.xpose.msra.mxu0 %v588
    %599 = vmatprep.subr.bf16.mxu0 0
    %600 = vmatpush1.bf16.xpose.msra.mxu0 %v591
    %601 = vmatprep.subr.bf16.mxu0 0
    %602 = vmatpush1.bf16.xpose.msra.mxu0 0
    %603 = vmatprep.subr.bf16.mxu0 0
    %604 = vmatpush1.bf16.xpose.msra.mxu0 0
    %605 = vmatprep.subr.bf16.mxu0 0
    %606 = vmatpush1.bf16.xpose.msra.mxu0 0
    %607 = vmatprep.subr.bf16.mxu0 0
    %608 = vmatpush1.bf16.xpose.msra.mxu0 0
    %609 = vmatprep.subr.bf16.mxu0 0
    %610 = vmatpush1.bf16.xpose.msra.mxu0 0
    %611 = vmatprep.subr.bf16.mxu0 0
    %612 = vmatpush1.bf16.xpose.msra.mxu0 0
    %613 = vmatprep.subr.bf16.mxu0 0
    %614 = vmatpush1.bf16.xpose.msra.mxu0 0
    %615 = vmatprep.subr.bf16.mxu0 0
    %616 = vmatpush1.bf16.xpose.msra.mxu0 0
    %617 = vmatprep.subr.bf16.mxu0 0
    %618 = vmatpush1.bf16.xpose.msra.mxu0 0
    %619 = vmatprep.subr.bf16.mxu0 0
    %620 = vmatpush1.bf16.xpose.msra.mxu0 0
    %621 = vmatprep.subr.bf16.mxu0 0
    %622 = vmatpush1.bf16.xpose.msra.mxu0 0
    %623 = vmatprep.subr.bf16.mxu0 0
    %624 = vmatpush1.bf16.xpose.msra.mxu0 0
    %625 = vmatprep.mubr.bf16.mxu0 0
    %626 = vmatmul.mubr.bf16.gmra.mrb[0].mxu0 %v558
    %v627 = vpop.f32.mrb[0].mxu0
    %v628 = vadd.f32 %v540, %v627
    %v629 = vpop.f32.mrb[0].mxu0
    %v630 = vpop.f32.mrb[0].mxu0
    %v631 = vadd.f32 %v541, %v630
    %v632 = vpop.f32.mrb[0].mxu0
    %633 = vmatprep.mubr.bf16.mxu0 0
    %634 = vmatmul.mubr.bf16.gmra.mrb[0].mxu0 %v561
    %v635 = vpop.f32.mrb[0].mxu0
    %v636 = vadd.f32 %v542, %v635
    %v637 = vpop.f32.mrb[0].mxu0
    %v638 = vpop.f32.mrb[0].mxu0
    %v639 = vadd.f32 %v543, %v638
    %v640 = vpop.f32.mrb[0].mxu0
    %641 = vmatprep.mubr.bf16.mxu0 0
    %642 = vmatmul.mubr.bf16.gmra.mrb[0].mxu0 %v564
    %v643 = vpop.f32.mrb[0].mxu0
    %v644 = vadd.f32 %v544, %v643
    %v645 = vpop.f32.mrb[0].mxu0
    %v646 = vpop.f32.mrb[0].mxu0
    %v647 = vadd.f32 %v545, %v646
    %v648 = vpop.f32.mrb[0].mxu0
    %649 = vmatprep.mubr.bf16.mxu0 0
    %650 = vmatmul.mubr.bf16.gmra.mrb[0].mxu0 %v567
    %v651 = vpop.f32.mrb[0].mxu0
    %v652 = vadd.f32 %v546, %v651
    %v653 = vpop.f32.mrb[0].mxu0
    %v654 = vpop.f32.mrb[0].mxu0
    %v655 = vadd.f32 %v547, %v654
    %v656 = vpop.f32.mrb[0].mxu0
    %657 = vmatprep.mubr.bf16.mxu0 0
    %658 = vmatmul.mubr.bf16.gmra.mrb[0].mxu0 %v570
    %v659 = vpop.f32.mrb[0].mxu0
    %v660 = vadd.f32 %v548, %v659
    %v661 = vpop.f32.mrb[0].mxu0
    %v662 = vpop.f32.mrb[0].mxu0
    %v663 = vadd.f32 %v549, %v662
    %v664 = vpop.f32.mrb[0].mxu0
    %665 = vmatprep.mubr.bf16.mxu0 0
    %666 = vmatmul.mubr.bf16.gmra.mrb[0].mxu0 %v573
    %v667 = vpop.f32.mrb[0].mxu0
    %v668 = vadd.f32 %v550, %v667
    %v669 = vpop.f32.mrb[0].mxu0
    %v670 = vpop.f32.mrb[0].mxu0
    %v671 = vadd.f32 %v551, %v670
    %v672 = vpop.f32.mrb[0].mxu0
    %673 = vmatprep.mubr.bf16.mxu0 0
    %674 = vmatmul.mubr.bf16.gmra.mrb[0].mxu0 %v576
    %v675 = vpop.f32.mrb[0].mxu0
    %v676 = vadd.f32 %v552, %v675
    %v677 = vpop.f32.mrb[0].mxu0
    %v678 = vpop.f32.mrb[0].mxu0
    %v679 = vadd.f32 %v553, %v678
    %v680 = vpop.f32.mrb[0].mxu0
    %681 = vmatprep.mubr.bf16.mxu0 0
    %682 = vmatmul.mubr.bf16.gmra.mrb[0].mxu0 %v579
    %v683 = vpop.f32.mrb[0].mxu0
    %v684 = vadd.f32 %v554, %v683
    %v685 = vpop.f32.mrb[0].mxu0
    %v686 = vpop.f32.mrb[0].mxu0
    %v687 = vadd.f32 %v555, %v686
    %v688 = vpop.f32.mrb[0].mxu0
    %689 = vdwg.mxu0
    %vm690 = vcmask 523264
    %v691 = vsel %vm690, %v628, -inf
    %692 = vmax.xlane.f32.xlu0 %v691
    %v693 = vpop.xlane.xlu0 %692
    %v694 = vsel %vm690, %v631, -inf
    %695 = vmax.xlane.f32.xlu0 %v694
    %v696 = vpop.xlane.xlu0 %695
    %v697 = vsel %vm690, %v636, -inf
    %698 = vmax.xlane.f32.xlu0 %v697
    %v699 = vpop.xlane.xlu0 %698
    %v700 = vsel %vm690, %v639, -inf
    %701 = vmax.xlane.f32.xlu0 %v700
    %v702 = vpop.xlane.xlu0 %701
    %v703 = vsel %vm690, %v644, -inf
    %704 = vmax.xlane.f32.xlu0 %v703
    %v705 = vpop.xlane.xlu0 %704
    %v706 = vsel %vm690, %v647, -inf
    %707 = vmax.xlane.f32.xlu0 %v706
    %v708 = vpop.xlane.xlu0 %707
    %v709 = vsel %vm690, %v652, -inf
    %710 = vmax.xlane.f32.xlu0 %v709
    %v711 = vpop.xlane.xlu0 %710
    %v712 = vsel %vm690, %v655, -inf
    %713 = vmax.xlane.f32.xlu0 %v712
    %v714 = vpop.xlane.xlu0 %713
    %v715 = vsel %vm690, %v660, -inf
    %716 = vmax.xlane.f32.xlu0 %v715
    %v717 = vpop.xlane.xlu0 %716
    %v718 = vsel %vm690, %v663, -inf
    %719 = vmax.xlane.f32.xlu0 %v718
    %v720 = vpop.xlane.xlu0 %719
    %v721 = vsel %vm690, %v668, -inf
    %722 = vmax.xlane.f32.xlu0 %v721
    %v723 = vpop.xlane.xlu0 %722
    %v724 = vsel %vm690, %v671, -inf
    %725 = vmax.xlane.f32.xlu0 %v724
    %v726 = vpop.xlane.xlu0 %725
    %v727 = vsel %vm690, %v676, -inf
    %728 = vmax.xlane.f32.xlu0 %v727
    %v729 = vpop.xlane.xlu0 %728
    %v730 = vsel %vm690, %v679, -inf
    %731 = vmax.xlane.f32.xlu0 %v730
    %v732 = vpop.xlane.xlu0 %731
    %v733 = vsel %vm690, %v684, -inf
    %734 = vmax.xlane.f32.xlu0 %v733
    %v735 = vpop.xlane.xlu0 %734
    %v736 = vsel %vm690, %v687, -inf
    %737 = vmax.xlane.f32.xlu0 %v736
    %v738 = vpop.xlane.xlu0 %737
    %v739 = vsub.f32 %v628, %v693
    %v740 = vsub.f32 %v631, %v696
    %v741 = vsub.f32 %v636, %v699
    %v742 = vsub.f32 %v639, %v702
    %v743 = vsub.f32 %v644, %v705
    %v744 = vsub.f32 %v647, %v708
    %v745 = vsub.f32 %v652, %v711
    %v746 = vsub.f32 %v655, %v714
    %v747 = vsub.f32 %v660, %v717
    %v748 = vsub.f32 %v663, %v720
    %v749 = vsub.f32 %v668, %v723
    %v750 = vsub.f32 %v671, %v726
    %v751 = vsub.f32 %v676, %v729
    %v752 = vsub.f32 %v679, %v732
    %v753 = vsub.f32 %v684, %v735
    %v754 = vsub.f32 %v687, %v738
    %v755 = vmul.f32 %v739, 1.442695
    %v756 = vpow.pop %v755
    %v757 = vmul.f32 %v740, 1.442695
    %v758 = vpow.pop %v757
    %v759 = vmul.f32 %v741, 1.442695
    %v760 = vpow.pop %v759
    %v761 = vmul.f32 %v742, 1.442695
    %v762 = vpow.pop %v761
    %v763 = vmul.f32 %v743, 1.442695
    %v764 = vpow.pop %v763
    %v765 = vmul.f32 %v744, 1.442695
    %v766 = vpow.pop %v765
    %v767 = vmul.f32 %v745, 1.442695
    %v768 = vpow.pop %v767
    %v769 = vmul.f32 %v746, 1.442695
    %v770 = vpow.pop %v769
    %v771 = vmul.f32 %v747, 1.442695
    %v772 = vpow.pop %v771
    %v773 = vmul.f32 %v748, 1.442695
    %v774 = vpow.pop %v773
    %v775 = vmul.f32 %v749, 1.442695
    %v776 = vpow.pop %v775
    %v777 = vmul.f32 %v750, 1.442695
    %v778 = vpow.pop %v777
    %v779 = vmul.f32 %v751, 1.442695
    %v780 = vpow.pop %v779
    %v781 = vmul.f32 %v752, 1.442695
    %v782 = vpow.pop %v781
    %v783 = vmul.f32 %v753, 1.442695
    %v784 = vpow.pop %v783
    %v785 = vmul.f32 %v754, 1.442695
    %v786 = vpow.pop %v785
    %v787 = vsel %vm690, %v756, 0.0
    %788 = vadd.xlane.f32.xlu0 %v787
    %v789 = vpop.xlane.xlu0 %788
    %v790 = vsel %vm690, %v758, 0.0
    %791 = vadd.xlane.f32.xlu0 %v790
    %v792 = vpop.xlane.xlu0 %791
    %v793 = vsel %vm690, %v760, 0.0
    %794 = vadd.xlane.f32.xlu0 %v793
    %v795 = vpop.xlane.xlu0 %794
    %v796 = vsel %vm690, %v762, 0.0
    %797 = vadd.xlane.f32.xlu0 %v796
    %v798 = vpop.xlane.xlu0 %797
    %v799 = vsel %vm690, %v764, 0.0
    %800 = vadd.xlane.f32.xlu0 %v799
    %v801 = vpop.xlane.xlu0 %800
    %v802 = vsel %vm690, %v766, 0.0
    %803 = vadd.xlane.f32.xlu0 %v802
    %v804 = vpop.xlane.xlu0 %803
    %v805 = vsel %vm690, %v768, 0.0
    %806 = vadd.xlane.f32.xlu0 %v805
    %v807 = vpop.xlane.xlu0 %806
    %v808 = vsel %vm690, %v770, 0.0
    %809 = vadd.xlane.f32.xlu0 %v808
    %v810 = vpop.xlane.xlu0 %809
    %v811 = vsel %vm690, %v772, 0.0
    %812 = vadd.xlane.f32.xlu0 %v811
    %v813 = vpop.xlane.xlu0 %812
    %v814 = vsel %vm690, %v774, 0.0
    %815 = vadd.xlane.f32.xlu0 %v814
    %v816 = vpop.xlane.xlu0 %815
    %v817 = vsel %vm690, %v776, 0.0
    %818 = vadd.xlane.f32.xlu0 %v817
    %v819 = vpop.xlane.xlu0 %818
    %v820 = vsel %vm690, %v778, 0.0
    %821 = vadd.xlane.f32.xlu0 %v820
    %v822 = vpop.xlane.xlu0 %821
    %v823 = vsel %vm690, %v780, 0.0
    %824 = vadd.xlane.f32.xlu0 %v823
    %v825 = vpop.xlane.xlu0 %824
    %v826 = vsel %vm690, %v782, 0.0
    %827 = vadd.xlane.f32.xlu0 %v826
    %v828 = vpop.xlane.xlu0 %827
    %v829 = vsel %vm690, %v784, 0.0
    %830 = vadd.xlane.f32.xlu0 %v829
    %v831 = vpop.xlane.xlu0 %830
    %v832 = vsel %vm690, %v786, 0.0
    %833 = vadd.xlane.f32.xlu0 %v832
    %v834 = vpop.xlane.xlu0 %833
    %v835 = vrcp.pop %v789
    %v836 = vrcp.pop %v792
    %v837 = vrcp.pop %v795
    %v838 = vrcp.pop %v798
    %v839 = vrcp.pop %v801
    %v840 = vrcp.pop %v804
    %v841 = vrcp.pop %v807
    %v842 = vrcp.pop %v810
    %v843 = vrcp.pop %v813
    %v844 = vrcp.pop %v816
    %v845 = vrcp.pop %v819
    %v846 = vrcp.pop %v822
    %v847 = vrcp.pop %v825
    %v848 = vrcp.pop %v828
    %v849 = vrcp.pop %v831
    %v850 = vrcp.pop %v834
    %v851 = vmul.f32 %v756, %v835
    %v852 = vmul.f32 %v758, %v836
    %v853 = vmul.f32 %v760, %v837
    %v854 = vmul.f32 %v762, %v838
    %v855 = vmul.f32 %v764, %v839
    %v856 = vmul.f32 %v766, %v840
    %v857 = vmul.f32 %v768, %v841
    %v858 = vmul.f32 %v770, %v842
    %v859 = vmul.f32 %v772, %v843
    %v860 = vmul.f32 %v774, %v844
    %v861 = vmul.f32 %v776, %v845
    %v862 = vmul.f32 %v778, %v846
    %v863 = vmul.f32 %v780, %v847
    %v864 = vmul.f32 %v782, %v848
    %v865 = vmul.f32 %v784, %v849
    %v866 = vmul.f32 %v786, %v850
    %v867 = vpack.c.bf16 %v852, %v851
    %v868 = vpack.c.bf16 %v854, %v853
    %v869 = vpack.c.bf16 %v856, %v855
    %v870 = vpack.c.bf16 %v858, %v857
    %v871 = vpack.c.bf16 %v860, %v859
    %v872 = vpack.c.bf16 %v862, %v861
    %v873 = vpack.c.bf16 %v864, %v863
    %v874 = vpack.c.bf16 %v866, %v865
    %v876 = vsel %vm690, %v867, 0
    %v879 = vsel %vm690, %v868, 0
    %v882 = vsel %vm690, %v869, 0
    %v885 = vsel %vm690, %v870, 0
    %v888 = vsel %vm690, %v871, 0
    %v891 = vsel %vm690, %v872, 0
    %v894 = vsel %vm690, %v873, 0
    %v897 = vsel %vm690, %v874, 0
    %899 = vmatprep.subr.bf16.mxu0 0
    %900 = vmatpush1.bf16.msra.mxu0 %v510
    %901 = vmatprep.subr.bf16.mxu0 0
    %902 = vmatpush1.bf16.msra.mxu0 %v511
    %903 = vmatprep.subr.bf16.mxu0 0
    %904 = vmatpush1.bf16.msra.mxu0 %v534
    %905 = vmatprep.subr.bf16.mxu0 0
    %906 = vmatpush1.bf16.msra.mxu0 %v538
    %907 = vmatprep.subr.bf16.mxu0 0
    %908 = vmatpush1.bf16.msra.mxu0 0
    %909 = vmatprep.subr.bf16.mxu0 0
    %910 = vmatpush1.bf16.msra.mxu0 0
    %911 = vmatprep.subr.bf16.mxu0 0
    %912 = vmatpush1.bf16.msra.mxu0 0
    %913 = vmatprep.subr.bf16.mxu0 0
    %914 = vmatpush1.bf16.msra.mxu0 0
    %915 = vmatprep.subr.bf16.mxu0 0
    %916 = vmatpush1.bf16.msra.mxu0 0
    %917 = vmatprep.subr.bf16.mxu0 0
    %918 = vmatpush1.bf16.msra.mxu0 0
    %919 = vmatprep.subr.bf16.mxu0 0
    %920 = vmatpush1.bf16.msra.mxu0 0
    %921 = vmatprep.subr.bf16.mxu0 0
    %922 = vmatpush1.bf16.msra.mxu0 0
    %923 = vmatprep.subr.bf16.mxu0 0
    %924 = vmatpush1.bf16.msra.mxu0 0
    %925 = vmatprep.subr.bf16.mxu0 0
    %926 = vmatpush1.bf16.msra.mxu0 0
    %927 = vmatprep.subr.bf16.mxu0 0
    %928 = vmatpush1.bf16.msra.mxu0 0
    %929 = vmatprep.subr.bf16.mxu0 0
    %930 = vmatpush1.bf16.msra.mxu0 0
    %931 = vmatprep.mubr.bf16.mxu0 0
    %932 = vmatmul.mubr.bf16.gmra.mrb[0].mxu0 %v876
    %v933 = vpop.f32.mrb[0].mxu0
    %v934 = vadd.f32 0.0, %v933
    %v935 = vpop.f32.mrb[0].mxu0
    %v936 = vpop.f32.mrb[0].mxu0
    %v937 = vadd.f32 0.0, %v936
    %v938 = vpop.f32.mrb[0].mxu0
    %939 = vmatprep.mubr.bf16.mxu0 0
    %940 = vmatmul.mubr.bf16.gmra.mrb[0].mxu0 %v879
    %v941 = vpop.f32.mrb[0].mxu0
    %v942 = vadd.f32 0.0, %v941
    %v943 = vpop.f32.mrb[0].mxu0
    %v944 = vpop.f32.mrb[0].mxu0
    %v945 = vadd.f32 0.0, %v944
    %v946 = vpop.f32.mrb[0].mxu0
    %947 = vmatprep.mubr.bf16.mxu0 0
    %948 = vmatmul.mubr.bf16.gmra.mrb[0].mxu0 %v882
    %v949 = vpop.f32.mrb[0].mxu0
    %v950 = vadd.f32 0.0, %v949
    %v951 = vpop.f32.mrb[0].mxu0
    %v952 = vpop.f32.mrb[0].mxu0
    %v953 = vadd.f32 0.0, %v952
    %v954 = vpop.f32.mrb[0].mxu0
    %955 = vmatprep.mubr.bf16.mxu0 0
    %956 = vmatmul.mubr.bf16.gmra.mrb[0].mxu0 %v885
    %v957 = vpop.f32.mrb[0].mxu0
    %v958 = vadd.f32 0.0, %v957
    %v959 = vpop.f32.mrb[0].mxu0
    %v960 = vpop.f32.mrb[0].mxu0
    %v961 = vadd.f32 0.0, %v960
    %v962 = vpop.f32.mrb[0].mxu0
    %963 = vmatprep.mubr.bf16.mxu0 0
    %964 = vmatmul.mubr.bf16.gmra.mrb[0].mxu0 %v888
    %v965 = vpop.f32.mrb[0].mxu0
    %v966 = vadd.f32 0.0, %v965
    %v967 = vpop.f32.mrb[0].mxu0
    %v968 = vpop.f32.mrb[0].mxu0
    %v969 = vadd.f32 0.0, %v968
    %v970 = vpop.f32.mrb[0].mxu0
    %971 = vmatprep.mubr.bf16.mxu0 0
    %972 = vmatmul.mubr.bf16.gmra.mrb[0].mxu0 %v891
    %v973 = vpop.f32.mrb[0].mxu0
    %v974 = vadd.f32 0.0, %v973
    %v975 = vpop.f32.mrb[0].mxu0
    %v976 = vpop.f32.mrb[0].mxu0
    %v977 = vadd.f32 0.0, %v976
    %v978 = vpop.f32.mrb[0].mxu0
    %979 = vmatprep.mubr.bf16.mxu0 0
    %980 = vmatmul.mubr.bf16.gmra.mrb[0].mxu0 %v894
    %v981 = vpop.f32.mrb[0].mxu0
    %v982 = vadd.f32 0.0, %v981
    %v983 = vpop.f32.mrb[0].mxu0
    %v984 = vpop.f32.mrb[0].mxu0
    %v985 = vadd.f32 0.0, %v984
    %v986 = vpop.f32.mrb[0].mxu0
    %987 = vmatprep.mubr.bf16.mxu0 0
    %988 = vmatmul.mubr.bf16.gmra.mrb[0].mxu0 %v897
    %v989 = vpop.f32.mrb[0].mxu0
    %v990 = vadd.f32 0.0, %v989
    %v991 = vpop.f32.mrb[0].mxu0
    %v992 = vpop.f32.mrb[0].mxu0
    %v993 = vadd.f32 0.0, %v992
    %v994 = vpop.f32.mrb[0].mxu0
    %995 = vdwg.mxu0
    %996 = vst.msk [vmem:[#allocation2] sm:$0xff] %vm556, %v934
    %997 = vst.msk [vmem:[#allocation2 + $0x8] sm:$0xff] %vm556, %v937
    %998 = vst.msk [vmem:[#allocation2 + $0x10] sm:$0xff] %vm556, %v942
    %999 = vst.msk [vmem:[#allocation2 + $0x18] sm:$0xff] %vm556, %v945
    %1002 = vrot.lane.b32.xlu0 %v950, 32
    %v1003 = vpop.permute.xlu0 %1002
    %1004 = vrot.lane.b32.xlu0 %v953, 32
    %v1005 = vpop.permute.xlu0 %1004
    %vm1008 = vcmask 523520
    %1009 = vst.msk [vmem:[#allocation2] sm:$0xff] %vm1008, %v1003
    %1010 = vst.msk [vmem:[#allocation2 + $0x8] sm:$0xff] %vm1008, %v1005
    %1013 = vrot.lane.b32.xlu0 %v958, 32
    %v1014 = vpop.permute.xlu0 %1013
    %1015 = vrot.lane.b32.xlu0 %v961, 32
    %v1016 = vpop.permute.xlu0 %1015
    %1019 = vst.msk [vmem:[#allocation2 + $0x10] sm:$0xff] %vm1008, %v1014
    %1020 = vst.msk [vmem:[#allocation2 + $0x18] sm:$0xff] %vm1008, %v1016
    %1023 = vrot.lane.b32.xlu0 %v966, 64
    %v1024 = vpop.permute.xlu0 %1023
    %1025 = vrot.lane.b32.xlu0 %v969, 64
    %v1026 = vpop.permute.xlu0 %1025
    %vm1029 = vcmask 785920
    %1030 = vst.msk [vmem:[#allocation2] sm:$0xff] %vm1029, %v1024
    %1031 = vst.msk [vmem:[#allocation2 + $0x8] sm:$0xff] %vm1029, %v1026
    %1034 = vrot.lane.b32.xlu0 %v974, 64
    %v1035 = vpop.permute.xlu0 %1034
    %1036 = vrot.lane.b32.xlu0 %v977, 64
    %v1037 = vpop.permute.xlu0 %1036
    %1040 = vst.msk [vmem:[#allocation2 + $0x10] sm:$0xff] %vm1029, %v1035
    %1041 = vst.msk [vmem:[#allocation2 + $0x18] sm:$0xff] %vm1029, %v1037
    %1044 = vrot.lane.b32.xlu0 %v982, 96
    %v1045 = vpop.permute.xlu0 %1044
    %1046 = vrot.lane.b32.xlu0 %v985, 96
    %v1047 = vpop.permute.xlu0 %1046
    %vm1050 = vcmask 1048320
    %1051 = vst.msk [vmem:[#allocation2] sm:$0xff] %vm1050, %v1045
    %1052 = vst.msk [vmem:[#allocation2 + $0x8] sm:$0xff] %vm1050, %v1047
    %1055 = vrot.lane.b32.xlu0 %v990, 96
    %v1056 = vpop.permute.xlu0 %1055
    %1057 = vrot.lane.b32.xlu0 %v993, 96
    %v1058 = vpop.permute.xlu0 %1057
    %1061 = vst.msk [vmem:[#allocation2 + $0x10] sm:$0xff] %vm1050, %v1056
    %1062 = vst.msk [vmem:[#allocation2 + $0x18] sm:$0xff] %vm1050, %v1058
    %v1063 = vld [vmem:[#allocation2] sm:$0xff]
    %v1064 = vld [vmem:[#allocation2 + $0x8] sm:$0xff]
    %v1065 = vld [vmem:[#allocation2 + $0x10] sm:$0xff]
    %v1066 = vld [vmem:[#allocation2 + $0x18] sm:$0xff]
    %v1067 = vpack.c.bf16 %v1064, %v1063
    %v1068 = vpack.c.bf16 %v1066, %v1065
    %v1069 = vld [vmem:[%s2] sm:$0xf]
    %v1070 = vld [vmem:[%s2 + $0x4] sm:$0xf]
    %v1071 = vld [vmem:[%s2 + $0x8] sm:$0xf]
    %v1072 = vld [vmem:[%s2 + $0xc] sm:$0xf]
    %v1073 = vld [vmem:[%s2 + $0x10] sm:$0xf]
    %v1074 = vld [vmem:[%s2 + $0x14] sm:$0xf]
    %v1075 = vld [vmem:[%s2 + $0x18] sm:$0xf]
    %v1076 = vld [vmem:[%s2 + $0x1c] sm:$0xf]
    %v1077 = vld [vmem:[%s2 + $0x20] sm:$0xf]
    %v1078 = vld [vmem:[%s2 + $0x24] sm:$0xf]
    %v1079 = vld [vmem:[%s2 + $0x28] sm:$0xf]
    %v1080 = vld [vmem:[%s2 + $0x2c] sm:$0xf]
    %v1081 = vld [vmem:[%s2 + $0x30] sm:$0xf]
    %v1082 = vld [vmem:[%s2 + $0x34] sm:$0xf]
    %v1083 = vld [vmem:[%s2 + $0x38] sm:$0xf]
    %v1084 = vld [vmem:[%s2 + $0x3c] sm:$0xf]
    %v1101 = vunpack.c.l.b16 %v1069
    %v1102 = vunpack.c.l.b16 %v1070
    %v1103 = vunpack.c.l.b16 %v1071
    %v1104 = vunpack.c.l.b16 %v1072
    %v1105 = vunpack.c.l.b16 %v1073
    %v1106 = vunpack.c.l.b16 %v1074
    %v1107 = vunpack.c.l.b16 %v1075
    %v1108 = vunpack.c.l.b16 %v1076
    %v1109 = vunpack.c.l.b16 %v1077
    %v1110 = vunpack.c.l.b16 %v1078
    %v1111 = vunpack.c.l.b16 %v1079
    %v1112 = vunpack.c.l.b16 %v1080
    %v1113 = vunpack.c.l.b16 %v1081
    %v1114 = vunpack.c.l.b16 %v1082
    %v1115 = vunpack.c.l.b16 %v1083
    %v1116 = vunpack.c.l.b16 %v1084
    %v1117 = vpack.c.b16 %v1102, %v1101
    %v1118 = vpack.c.b16 %v1104, %v1103
    %v1119 = vpack.c.b16 %v1106, %v1105
    %v1120 = vpack.c.b16 %v1108, %v1107
    %v1121 = vpack.c.b16 %v1110, %v1109
    %v1122 = vpack.c.b16 %v1112, %v1111
    %v1123 = vpack.c.b16 %v1114, %v1113
    %v1124 = vpack.c.b16 %v1116, %v1115
    %1133 = vmatprep.subr.bf16.mxu0 0
    %1134 = vmatpush1.bf16.msra.mxu0 %v1117
    %1135 = vmatprep.subr.bf16.mxu0 0
    %1136 = vmatpush1.bf16.msra.mxu0 %v1118
    %1137 = vmatprep.subr.bf16.mxu0 0
    %1138 = vmatpush1.bf16.msra.mxu0 %v1119
    %1139 = vmatprep.subr.bf16.mxu0 0
    %1140 = vmatpush1.bf16.msra.mxu0 %v1120
    %1141 = vmatprep.subr.bf16.mxu0 0
    %1142 = vmatpush1.bf16.msra.mxu0 %v1121
    %1143 = vmatprep.subr.bf16.mxu0 0
    %1144 = vmatpush1.bf16.msra.mxu0 %v1122
    %1145 = vmatprep.subr.bf16.mxu0 0
    %1146 = vmatpush1.bf16.msra.mxu0 %v1123
    %1147 = vmatprep.subr.bf16.mxu0 0
    %1148 = vmatpush1.bf16.msra.mxu0 %v1124
    %1149 = vmatprep.subr.bf16.mxu0 0
    %1150 = vmatpush1.bf16.msra.mxu0 0
    %1151 = vmatprep.subr.bf16.mxu0 0
    %1152 = vmatpush1.bf16.msra.mxu0 0
    %1153 = vmatprep.subr.bf16.mxu0 0
    %1154 = vmatpush1.bf16.msra.mxu0 0
    %1155 = vmatprep.subr.bf16.mxu0 0
    %1156 = vmatpush1.bf16.msra.mxu0 0
    %1157 = vmatprep.subr.bf16.mxu0 0
    %1158 = vmatpush1.bf16.msra.mxu0 0
    %1159 = vmatprep.subr.bf16.mxu0 0
    %1160 = vmatpush1.bf16.msra.mxu0 0
    %1161 = vmatprep.subr.bf16.mxu0 0
    %1162 = vmatpush1.bf16.msra.mxu0 0
    %1163 = vmatprep.subr.bf16.mxu0 0
    %1164 = vmatpush1.bf16.msra.mxu0 0
    %1165 = vmatprep.mubr.bf16.mxu0 0
    %1166 = vmatmul.mubr.bf16.gmra.mrb[0].mxu0 %v1067
    %v1167 = vpop.f32.mrb[0].mxu0
    %v1168 = vadd.f32 0.0, %v1167
    %v1169 = vpop.f32.mrb[0].mxu0
    %v1170 = vpop.f32.mrb[0].mxu0
    %v1171 = vadd.f32 0.0, %v1170
    %v1172 = vpop.f32.mrb[0].mxu0
    %1173 = vmatprep.mubr.bf16.mxu0 0
    %1174 = vmatmul.mubr.bf16.gmra.mrb[0].mxu0 %v1068
    %v1175 = vpop.f32.mrb[0].mxu0
    %v1176 = vadd.f32 0.0, %v1175
    %v1177 = vpop.f32.mrb[0].mxu0
    %v1178 = vpop.f32.mrb[0].mxu0
    %v1179 = vadd.f32 0.0, %v1178
    %v1180 = vpop.f32.mrb[0].mxu0
    %1181 = vdwg.mxu0
    %1182 = vst [vmem:[#allocation6] sm:$0xff] %v1168
    %1183 = vst [vmem:[#allocation6 + $0x8] sm:$0xff] %v1171
    %1184 = vst [vmem:[#allocation6 + $0x10] sm:$0xff] %v1176
    %1185 = vst [vmem:[#allocation6 + $0x18] sm:$0xff] %v1179
    // Predicated region
    $region30: #{rotary_attention.1} parent=1 // pred_check
      _
    $region31: #{rotary_attention.1} parent=1 // pred_check_branch
      %1187 = sbr.rel (0) target = $region33
    $region32: #{rotary_attention.1} parent=1 // pred_region
      %s1189 = ssub.s32 512, 512
      %1190 = vsyncadd [#allocation5], %s1189
      %s1191 = sshll.u32 [#allocation6], 4
      %s1192 = int_to_ptr.vmem [resolvable:$true] %s1191
      %1197 = dma.vmem_to_hbm [thread:$0]  %s1192, 512, %s6, [#allocation5], 128, 128, 8
    $region33: #{rotary_attention.1} parent=1 // pred_fallthru
      _
    // Predicated region
    $region34: #{rotary_attention.1} parent=1 // pred_check
      _
    $region35: #{rotary_attention.1} parent=1 // pred_check_branch
      %1199 = sbr.rel (0) target = $region37
    $region36: #{rotary_attention.1} parent=1 // pred_region
      %1200 = dma.done [#allocation5], 512
    $region37: #{rotary_attention.1} parent=1 // pred_fallthru
      _
    %1201 = vsyncpa [#allocation4], 1
    %1202 = vsyncpa [#allocation5], 1

</llo_original>
